<compile_context>
chip_gen: v6e
topology: v6e:2x2x1
jax: 0.10.0
libtpu: 0.0.40
codegen_flags: <defaults>
</compile_context>

<pallas_src>
import functools

import jax
import jax.numpy as jnp
from jax.experimental import pallas as pl
from jax.experimental.pallas import tpu as pltpu

BN_EPS = 1e-5        # nn.BatchNorm2d default eps
NORM_EPS = 1e-12     # F.normalize default eps
LOG_EPS = 1e-6
LANE = 128
SUBLANE = 8


def _round_up(x, m):
    return (x + m - 1) // m * m


# ---------------------------------------------------------------------------
# Kernels
# ---------------------------------------------------------------------------

def _stats1_kernel(x_ref, w1_ref, o_ref):
    # x_ref: (tile_m, cin_pad), w1_ref: (cin_pad, Cout), o_ref: (2, Cout)
    # Padded x rows are zero -> contribute zero to both sums.
    y = jnp.dot(x_ref[...], w1_ref[...], preferred_element_type=jnp.float32)
    o_ref[...] = jnp.concatenate(
        [jnp.sum(y, axis=0, keepdims=True),
         jnp.sum(y * y, axis=0, keepdims=True)], axis=0)


def _stats2_kernel(x_ref, w1_ref, w2_ref, s1_ref, o_ref, *, tile_m, m_real):
    # s1_ref: (2, Cout) = [bn1 scale, bn1 shift]
    s1 = s1_ref[...]
    y = jnp.dot(x_ref[...], w1_ref[...], preferred_element_type=jnp.float32)
    y = y * s1[0:1, :] + s1[1:2, :]
    y = jnp.maximum(y, 0.0)
    y = jnp.dot(y, w2_ref[...], preferred_element_type=jnp.float32)
    # Mask rows beyond the real M (they are nonzero after the bn1 shift).
    row = (jax.lax.broadcasted_iota(jnp.int32, (tile_m, 1), 0)
           + pl.program_id(0) * tile_m)
    y = jnp.where(row < m_real, y, 0.0)
    o_ref[...] = jnp.concatenate(
        [jnp.sum(y, axis=0, keepdims=True),
         jnp.sum(y * y, axis=0, keepdims=True)], axis=0)


def _final_kernel(x_ref, w1_ref, w2_ref, s1_ref, s2_ref, o_ref):
    s1 = s1_ref[...]
    s2 = s2_ref[...]
    y = jnp.dot(x_ref[...], w1_ref[...], preferred_element_type=jnp.float32)
    y = y * s1[0:1, :] + s1[1:2, :]            # bn1 (affine folded)
    y = jnp.maximum(y, 0.0)                    # ReLU
    y = jnp.dot(y, w2_ref[...], preferred_element_type=jnp.float32)
    y = y * s2[0:1, :] + s2[1:2, :]            # bn2 + gamma*x + beta (folded)
    # sigmoid(log(exp(y)+eps)) == (exp(y)+eps) / (exp(y)+eps+1).
    # Clamp the exp argument so exp stays finite (sigmoid(60) == 1.0 in f32 anyway).
    t = jnp.exp(jnp.minimum(y, 60.0)) + LOG_EPS
    o_ref[...] = t / (t + 1.0)


# ---------------------------------------------------------------------------
# Wrapper
# ---------------------------------------------------------------------------

def uncertainty_head(x_nchw, fc1, fc2, bn1_gamma, bn1_beta, gamma, beta,
                     *, tile_m=1024):
    """Forward pass of Uncertainty_head.  x_nchw: (N, Cin, H, W)."""
    N, Cin, H, W = x_nchw.shape
    Cout = fc1.shape[0]
    M = N * H * W
    f32 = jnp.float32

    tile_m = min(tile_m, _round_up(M, SUBLANE))
    m_pad = _round_up(M, tile_m)
    cin_pad = _round_up(Cin, LANE)
    n_tiles = m_pad // tile_m

    # Hoisted out of the kernel: F.normalize(w, dim=-1), transpose to (K, N)
    # matmul layout, zero-pad the contraction dim to a lane multiple.
    fc1 = fc1.astype(f32)
    fc2 = fc2.astype(f32)
    w1 = fc1 / jnp.maximum(jnp.linalg.norm(fc1, axis=-1, keepdims=True), NORM_EPS)
    w2 = fc2 / jnp.maximum(jnp.linalg.norm(fc2, axis=-1, keepdims=True), NORM_EPS)
    w1t = jnp.zeros((cin_pad, Cout), f32).at[:Cin, :].set(w1.T)
    w2t = w2.T

    # NCHW -> NHWC -> (M, Cin), zero-padded to (m_pad, cin_pad).
    # TODO(synk): the relayout is still a standalone XLA transpose; folding it into
    # the kernel's own DMA pipeline would need per-(batch, spatial-tile) blocks.
    x2d = jnp.transpose(x_nchw, (0, 2, 3, 1)).reshape(M, Cin).astype(f32)
    x2d = jnp.zeros((m_pad, cin_pad), f32).at[:M, :Cin].set(x2d)

    x_spec = pl.BlockSpec((tile_m, cin_pad), lambda i: (i, 0))
    w1_spec = pl.BlockSpec((cin_pad, Cout), lambda i: (0, 0))
    w2_spec = pl.BlockSpec((Cout, Cout), lambda i: (0, 0))
    ss_spec = pl.BlockSpec((2, Cout), lambda i: (0, 0))
    stats_out = pl.BlockSpec((None, 2, Cout), lambda i: (i, 0, 0))

    params = pltpu.CompilerParams(
        dimension_semantics=("parallel",),
        vmem_limit_bytes=32 * 1024 * 1024,
    )

    # ---- Pass A: bn1 batch statistics -------------------------------------
    p1 = pl.pallas_call(
        _stats1_kernel,
        out_shape=jax.ShapeDtypeStruct((n_tiles, 2, Cout), f32),
        grid=(n_tiles,),
        in_specs=[x_spec, w1_spec],
        out_specs=stats_out,
        compiler_params=params,
    )(x2d, w1t)
    s = jnp.sum(p1, axis=0)                                   # (2, Cout)
    mean1 = s[0] / M
    var1 = jnp.maximum(s[1] / M - mean1 * mean1, 0.0)
    inv1 = jax.lax.rsqrt(var1 + BN_EPS)
    scale1 = bn1_gamma.astype(f32) * inv1
    shift1 = bn1_beta.astype(f32) - mean1 * scale1
    s1 = jnp.stack([scale1, shift1], axis=0)                  # (2, Cout)

    # ---- Pass B: bn2 batch statistics -------------------------------------
    p2 = pl.pallas_call(
        functools.partial(_stats2_kernel, tile_m=tile_m, m_real=M),
        out_shape=jax.ShapeDtypeStruct((n_tiles, 2, Cout), f32),
        grid=(n_tiles,),
        in_specs=[x_spec, w1_spec, w2_spec, ss_spec],
        out_specs=stats_out,
        compiler_params=params,
    )(x2d, w1t, w2t, s1)
    s = jnp.sum(p2, axis=0)
    mean2 = s[0] / M
    var2 = jnp.maximum(s[1] / M - mean2 * mean2, 0.0)
    inv2 = jax.lax.rsqrt(var2 + BN_EPS)
    g = jnp.asarray(gamma, f32).reshape(())
    b = jnp.asarray(beta, f32).reshape(())
    scale2 = g * inv2                                         # bn2 (no affine) * gamma
    shift2 = b - mean2 * scale2                               # ... + beta
    s2 = jnp.stack([scale2, shift2], axis=0)                  # (2, Cout)

    # ---- Pass C: full forward + pointwise tail -----------------------------
    out2d = pl.pallas_call(
        _final_kernel,
        out_shape=jax.ShapeDtypeStruct((m_pad, Cout), f32),
        grid=(n_tiles,),
        in_specs=[x_spec, w1_spec, w2_spec, ss_spec, ss_spec],
        out_specs=pl.BlockSpec((tile_m, Cout), lambda i: (i, 0)),
        compiler_params=params,
    )(x2d, w1t, w2t, s1, s2)

    # (M, Cout) -> NHWC -> NCHW
    return jnp.transpose(out2d[:M].reshape(N, H, W, Cout), (0, 3, 1, 2))


# ---------------------------------------------------------------------------
# Pure-JAX reference (mirrors the PyTorch forward) for correctness checking
# ---------------------------------------------------------------------------

def _reference(x_nchw, fc1, fc2, bn1_gamma, bn1_beta, gamma, beta):
    N, Cin, H, W = x_nchw.shape
    Cout = fc1.shape[0]
    x = jnp.transpose(x_nchw, (0, 2, 3, 1)).reshape(-1, Cin)
    w1n = fc1 / jnp.maximum(jnp.linalg.norm(fc1, axis=-1, keepdims=True), NORM_EPS)
    w2n = fc2 / jnp.maximum(jnp.linalg.norm(fc2, axis=-1, keepdims=True), NORM_EPS)
    y = x @ w1n.T
    mu, var = jnp.mean(y, 0), jnp.var(y, 0)
    y = (y - mu) / jnp.sqrt(var + BN_EPS) * bn1_gamma + bn1_beta
    y = jnp.maximum(y, 0.0)
    y = y @ w2n.T
    mu, var = jnp.mean(y, 0), jnp.var(y, 0)
    y = (y - mu) / jnp.sqrt(var + BN_EPS)
    y = gamma * y + beta
    y = jax.nn.sigmoid(jnp.log(jnp.exp(y) + LOG_EPS))
    return jnp.transpose(y.reshape(N, H, W, Cout), (0, 3, 1, 2))


if __name__ == "__main__":
    # Module defaults: in_feat=304, out_feat=256; small spatial extent for the demo.
    N, H, W = 2, 8, 8
    in_feat, out_feat = 304, 256

    key = jax.random.PRNGKey(0)
    kx, k1, k2 = jax.random.split(key, 3)

    x = jax.random.normal(kx, (N, in_feat, H, W), dtype=jnp.float32)

    # Deterministic kaiming_normal_ style init: std = sqrt(2 / fan_in)
    fc1 = jax.random.normal(k1, (out_feat, in_feat), jnp.float32) * jnp.sqrt(2.0 / in_feat)
    fc2 = jax.random.normal(k2, (out_feat, out_feat), jnp.float32) * jnp.sqrt(2.0 / out_feat)
    bn1_gamma = jnp.ones((out_feat,), jnp.float32)   # BatchNorm2d affine init
    bn1_beta = jnp.zeros((out_feat,), jnp.float32)
    gamma = jnp.float32(1.0)
    beta = jnp.float32(0.0)

    out = uncertainty_head(x, fc1, fc2, bn1_gamma, bn1_beta, gamma, beta)
    out = jax.block_until_ready(out)

    ref = _reference(x, fc1, fc2, bn1_gamma, bn1_beta, gamma, beta)
    assert out.shape == (N, out_feat, H, W)
    assert jnp.allclose(out, ref, atol=1e-4, rtol=1e-4), float(jnp.max(jnp.abs(out - ref)))

    print("KERNEL_OK")
</pallas_src>

<mosaic_0001>
module attributes {stable_mosaic.version = 11 : i64} {
  func.func @_stats1_kernel(%arg0: i32, %arg1: memref<128x384xf32, #tpu.memory_space<vmem>>, %arg2: memref<384x256xf32, #tpu.memory_space<vmem>>, %arg3: memref<1x2x256xf32, #tpu.memory_space<vmem>>) attributes {dimension_semantics = [#tpu.dimension_semantics<parallel>], iteration_bounds = array<i64: 1>, scalar_prefetch = 0 : i64, scratch_operands = 0 : i64, tpu.core_type = #tpu.core_type<tc>, window_params = [{transform_indices = @transform_0, window_bounds = array<i64: 128, 384>}, {pipeline_mode = #tpu.pipeline_mode<synchronous>, transform_indices = @transform_1, window_bounds = array<i64: 384, 256>}, {transform_indices = @transform_2, window_bounds = array<i64: 1, 2, 256>}]} {
    %c0 = arith.constant 0 : index
    %c0_0 = arith.constant 0 : index
    %0 = vector.load %arg1[%c0, %c0_0] : memref<128x384xf32, #tpu.memory_space<vmem>>, vector<128x384xf32>
    %c0_1 = arith.constant 0 : index
    %c0_2 = arith.constant 0 : index
    %1 = vector.load %arg2[%c0_1, %c0_2] : memref<384x256xf32, #tpu.memory_space<vmem>>, vector<384x256xf32>
    %cst = arith.constant dense<0.000000e+00> : vector<128x256xf32>
    %2 = tpu.matmul %0, %1, %cst {dimension_numbers = #tpu.dot_dimension_numbers<[1], [0], [0], [1], [0, 0, 1, 1], [], []>} : vector<128x384xf32>, vector<384x256xf32>, vector<128x256xf32> -> vector<128x256xf32>
    %cst_3 = arith.constant dense<0.000000e+00> : vector<256xf32>
    %3 = vector.multi_reduction <add>, %2, %cst_3 [0] : vector<128x256xf32> to vector<256xf32>
    %4 = vector.shape_cast %3 : vector<256xf32> to vector<1x256xf32>
    %5 = arith.mulf %2, %2 : vector<128x256xf32>
    %cst_4 = arith.constant dense<0.000000e+00> : vector<256xf32>
    %6 = vector.multi_reduction <add>, %5, %cst_4 [0] : vector<128x256xf32> to vector<256xf32>
    %7 = vector.shape_cast %6 : vector<256xf32> to vector<1x256xf32>
    %8 = tpu.concatenate %4, %7 in 0 : vector<1x256xf32>, vector<1x256xf32> -> vector<2x256xf32>
    %c0_5 = arith.constant 0 : index
    %c0_6 = arith.constant 0 : index
    %c0_7 = arith.constant 0 : index
    %9 = vector.load %arg3[%c0_5, %c0_6, %c0_7] : memref<1x2x256xf32, #tpu.memory_space<vmem>>, vector<1x2x256xf32>
    %10 = vector.shape_cast %9 : vector<1x2x256xf32> to vector<2x256xf32>
    %11 = vector.shape_cast %8 : vector<2x256xf32> to vector<1x2x256xf32>
    tpu.vector_store %arg3[%c0_5, %c0_6, %c0_7], %11 {strides = array<i32>} : memref<1x2x256xf32, #tpu.memory_space<vmem>>, vector<1x2x256xf32>,
    return
  }
  func.func @transform_0(%arg0: i32) -> (i32, i32) {
    %c0_i32 = arith.constant 0 : i32
    %c0_i32_0 = arith.constant 0 : i32
    return %arg0, %c0_i32 : i32, i32
  }
  func.func @transform_1(%arg0: i32) -> (i32, i32) {
    %c0_i32 = arith.constant 0 : i32
    %c0_i32_0 = arith.constant 0 : i32
    %c0_i32_1 = arith.constant 0 : i32
    return %c0_i32, %c0_i32_0 : i32, i32
  }
  func.func @transform_2(%arg0: i32) -> (i32, i32, i32) {
    %c0_i32 = arith.constant 0 : i32
    %c0_i32_0 = arith.constant 0 : i32
    %c0_i32_1 = arith.constant 0 : i32
    return %arg0, %c0_i32, %c0_i32_0 : i32, i32, i32
  }
}

</mosaic_0001>

<llo_original>
// kernel: tpu_custom_call.1
$region0: #{tpu_custom_call.1}
  #allocation0 [shape = 'u32[]', space=smem, size = 0x4, offset = 0x4, fixed_abs, tag = 'smem constant byte address 0x4 - core index']
  #allocation1 [shape = 'u32[144,128]{1,0:T(1,128)}', space=vmem, size = 0x12000, scoped, tag = 'internal scratch']
  %s0 = inlined_call_operand.hbm [shape: f32[128,384], index: 0, kind: input, shape index: {}]
  %s1 = inlined_call_operand.hbm [shape: f32[384,256], index: 1, kind: input, shape index: {}]
  %s2 = inlined_call_operand.hbm [shape: f32[1,2,256], index: 2, kind: output, shape index: {}]
  %s3 = sld [smem:[#allocation0]]
  $region26: #{tpu_custom_call.1} parent=0
    _
  %s5 = ssub.s32 1, %s3
  %s6 = scalar_select 0, %s5, %s3
  $region1: #{tpu_custom_call.1} parent=0
    #allocation2 [shape = 'u8[196608]{0}', space=vmem, size = 0x30000, scoped, tag = 'input window, operand 0, single buffered']
    #allocation3 [shape = 's32[1]{0}', space=sflag, size = 0x4, scoped, tag = 'scoped memory for tpu_custom_call.1']
    #allocation4 [shape = 's32[1]{0}', space=sflag, size = 0x4, scoped, tag = 'scoped memory for tpu_custom_call.1']
    #allocation5 [shape = 'u8[393216]{0}', space=vmem, size = 0x60000, scoped, tag = 'input window, operand 1, single buffered']
    #allocation6 [shape = 's32[1]{0}', space=sflag, size = 0x4, scoped, tag = 'scoped memory for tpu_custom_call.1']
    #allocation7 [shape = 'u8[2048]{0}', space=vmem, size = 0x800, scoped, tag = 'output window, operand 0, single buffered']
    %7 = vsyncpa [#allocation3], 0
    %8 = vsyncpa [#allocation6], 0
    %9 = vsyncpa [#allocation4], 0
    // Predicated region
    $region2: #{tpu_custom_call.1} parent=1 // pred_check
      _
    $region3: #{tpu_custom_call.1} parent=1 // pred_check_branch
      %11 = sbr.rel (0) target = $region5
    $region4: #{tpu_custom_call.1} parent=1 // pred_region
      %s13 = ssub.s32 6144, 6144
      %14 = vsyncadd [#allocation3], %s13
      %s15 = sshll.u32 [#allocation2], 4
      %s16 = int_to_ptr.vmem [resolvable:$true] %s15
      %21 = dma.hbm_to_vmem [thread:$0]  %s0, 6144, %s16, [#allocation3], 384, 384, 24
    $region5: #{tpu_custom_call.1} parent=1 // pred_fallthru
      _
    // Predicated region
    $region6: #{tpu_custom_call.1} parent=1 // pred_check
      _
    $region7: #{tpu_custom_call.1} parent=1 // pred_check_branch
      %23 = sbr.rel (0) target = $region9
    $region8: #{tpu_custom_call.1} parent=1 // pred_region
      %s25 = ssub.s32 12288, 12288
      %26 = vsyncadd [#allocation6], %s25
      %s27 = sshll.u32 [#allocation5], 4
      %s28 = int_to_ptr.vmem [resolvable:$true] %s27
      %33 = dma.hbm_to_vmem [thread:$0]  %s1, 12288, %s28, [#allocation6], 256, 256, 16
    $region9: #{tpu_custom_call.1} parent=1 // pred_fallthru
      _
    // Predicated region
    $region10: #{tpu_custom_call.1} parent=1 // pred_check
      _
    $region11: #{tpu_custom_call.1} parent=1 // pred_check_branch
      %35 = sbr.rel (0) target = $region13
    $region12: #{tpu_custom_call.1} parent=1 // pred_region
      %36 = dma.done [#allocation3], 6144
    $region13: #{tpu_custom_call.1} parent=1 // pred_fallthru
      _
    // Predicated region
    $region14: #{tpu_custom_call.1} parent=1 // pred_check
      _
    $region15: #{tpu_custom_call.1} parent=1 // pred_check_branch
      %38 = sbr.rel (0) target = $region17
    $region16: #{tpu_custom_call.1} parent=1 // pred_region
      %39 = dma.done [#allocation6], 12288
    $region17: #{tpu_custom_call.1} parent=1 // pred_fallthru
      _
    %v40 = vld [vmem:[#allocation2] sm:$0xff]
    %v41 = vld [vmem:[#allocation2 + $0x8] sm:$0xff]
    %v42 = vld [vmem:[#allocation2 + $0x10] sm:$0xff]
    %v43 = vld [vmem:[#allocation2 + $0x18] sm:$0xff]
    %v44 = vld [vmem:[#allocation2 + $0x20] sm:$0xff]
    %v45 = vld [vmem:[#allocation2 + $0x28] sm:$0xff]
    %v46 = vld [vmem:[#allocation2 + $0x30] sm:$0xff]
    %v47 = vld [vmem:[#allocation2 + $0x38] sm:$0xff]
    %v48 = vld [vmem:[#allocation2 + $0x40] sm:$0xff]
    %v49 = vld [vmem:[#allocation2 + $0x48] sm:$0xff]
    %v50 = vld [vmem:[#allocation2 + $0x50] sm:$0xff]
    %v51 = vld [vmem:[#allocation2 + $0x58] sm:$0xff]
    %v52 = vld [vmem:[#allocation2 + $0x60] sm:$0xff]
    %v53 = vld [vmem:[#allocation2 + $0x68] sm:$0xff]
    %v54 = vld [vmem:[#allocation2 + $0x70] sm:$0xff]
    %v55 = vld [vmem:[#allocation2 + $0x78] sm:$0xff]
    %v56 = vld [vmem:[#allocation2 + $0x80] sm:$0xff]
    %v57 = vld [vmem:[#allocation2 + $0x88] sm:$0xff]
    %v58 = vld [vmem:[#allocation2 + $0x90] sm:$0xff]
    %v59 = vld [vmem:[#allocation2 + $0x98] sm:$0xff]
    %v60 = vld [vmem:[#allocation2 + $0xa0] sm:$0xff]
    %v61 = vld [vmem:[#allocation2 + $0xa8] sm:$0xff]
    %v62 = vld [vmem:[#allocation2 + $0xb0] sm:$0xff]
    %v63 = vld [vmem:[#allocation2 + $0xb8] sm:$0xff]
    %v64 = vld [vmem:[#allocation2 + $0xc0] sm:$0xff]
    %v65 = vld [vmem:[#allocation2 + $0xc8] sm:$0xff]
    %v66 = vld [vmem:[#allocation2 + $0xd0] sm:$0xff]
    %v67 = vld [vmem:[#allocation2 + $0xd8] sm:$0xff]
    %v68 = vld [vmem:[#allocation2 + $0xe0] sm:$0xff]
    %v69 = vld [vmem:[#allocation2 + $0xe8] sm:$0xff]
    %v70 = vld [vmem:[#allocation2 + $0xf0] sm:$0xff]
    %v71 = vld [vmem:[#allocation2 + $0xf8] sm:$0xff]
    %v72 = vld [vmem:[#allocation2 + $0x100] sm:$0xff]
    %v73 = vld [vmem:[#allocation2 + $0x108] sm:$0xff]
    %v74 = vld [vmem:[#allocation2 + $0x110] sm:$0xff]
    %v75 = vld [vmem:[#allocation2 + $0x118] sm:$0xff]
    %v76 = vld [vmem:[#allocation2 + $0x120] sm:$0xff]
    %v77 = vld [vmem:[#allocation2 + $0x128] sm:$0xff]
    %v78 = vld [vmem:[#allocation2 + $0x130] sm:$0xff]
    %v79 = vld [vmem:[#allocation2 + $0x138] sm:$0xff]
    %v80 = vld [vmem:[#allocation2 + $0x140] sm:$0xff]
    %v81 = vld [vmem:[#allocation2 + $0x148] sm:$0xff]
    %v82 = vld [vmem:[#allocation2 + $0x150] sm:$0xff]
    %v83 = vld [vmem:[#allocation2 + $0x158] sm:$0xff]
    %v84 = vld [vmem:[#allocation2 + $0x160] sm:$0xff]
    %v85 = vld [vmem:[#allocation2 + $0x168] sm:$0xff]
    %v86 = vld [vmem:[#allocation2 + $0x170] sm:$0xff]
    %v87 = vld [vmem:[#allocation2 + $0x178] sm:$0xff]
    %v88 = vld [vmem:[#allocation5] sm:$0xff]
    %v89 = vld [vmem:[#allocation5 + $0x8] sm:$0xff]
    %v90 = vld [vmem:[#allocation5 + $0x10] sm:$0xff]
    %v91 = vld [vmem:[#allocation5 + $0x18] sm:$0xff]
    %v92 = vld [vmem:[#allocation5 + $0x20] sm:$0xff]
    %v93 = vld [vmem:[#allocation5 + $0x28] sm:$0xff]
    %v94 = vld [vmem:[#allocation5 + $0x30] sm:$0xff]
    %v95 = vld [vmem:[#allocation5 + $0x38] sm:$0xff]
    %v96 = vld [vmem:[#allocation5 + $0x40] sm:$0xff]
    %v97 = vld [vmem:[#allocation5 + $0x48] sm:$0xff]
    %v98 = vld [vmem:[#allocation5 + $0x50] sm:$0xff]
    %v99 = vld [vmem:[#allocation5 + $0x58] sm:$0xff]
    %v100 = vld [vmem:[#allocation5 + $0x60] sm:$0xff]
    %v101 = vld [vmem:[#allocation5 + $0x68] sm:$0xff]
    %v102 = vld [vmem:[#allocation5 + $0x70] sm:$0xff]
    %v103 = vld [vmem:[#allocation5 + $0x78] sm:$0xff]
    %v104 = vld [vmem:[#allocation5 + $0x80] sm:$0xff]
    %v105 = vld [vmem:[#allocation5 + $0x88] sm:$0xff]
    %v106 = vld [vmem:[#allocation5 + $0x90] sm:$0xff]
    %v107 = vld [vmem:[#allocation5 + $0x98] sm:$0xff]
    %v108 = vld [vmem:[#allocation5 + $0xa0] sm:$0xff]
    %v109 = vld [vmem:[#allocation5 + $0xa8] sm:$0xff]
    %v110 = vld [vmem:[#allocation5 + $0xb0] sm:$0xff]
    %v111 = vld [vmem:[#allocation5 + $0xb8] sm:$0xff]
    %v112 = vld [vmem:[#allocation5 + $0xc0] sm:$0xff]
    %v113 = vld [vmem:[#allocation5 + $0xc8] sm:$0xff]
    %v114 = vld [vmem:[#allocation5 + $0xd0] sm:$0xff]
    %v115 = vld [vmem:[#allocation5 + $0xd8] sm:$0xff]
    %v116 = vld [vmem:[#allocation5 + $0xe0] sm:$0xff]
    %v117 = vld [vmem:[#allocation5 + $0xe8] sm:$0xff]
    %v118 = vld [vmem:[#allocation5 + $0xf0] sm:$0xff]
    %v119 = vld [vmem:[#allocation5 + $0xf8] sm:$0xff]
    %v120 = vld [vmem:[#allocation5 + $0x100] sm:$0xff]
    %v121 = vld [vmem:[#allocation5 + $0x108] sm:$0xff]
    %v122 = vld [vmem:[#allocation5 + $0x110] sm:$0xff]
    %v123 = vld [vmem:[#allocation5 + $0x118] sm:$0xff]
    %v124 = vld [vmem:[#allocation5 + $0x120] sm:$0xff]
    %v125 = vld [vmem:[#allocation5 + $0x128] sm:$0xff]
    %v126 = vld [vmem:[#allocation5 + $0x130] sm:$0xff]
    %v127 = vld [vmem:[#allocation5 + $0x138] sm:$0xff]
    %v128 = vld [vmem:[#allocation5 + $0x140] sm:$0xff]
    %v129 = vld [vmem:[#allocation5 + $0x148] sm:$0xff]
    %v130 = vld [vmem:[#allocation5 + $0x150] sm:$0xff]
    %v131 = vld [vmem:[#allocation5 + $0x158] sm:$0xff]
    %v132 = vld [vmem:[#allocation5 + $0x160] sm:$0xff]
    %v133 = vld [vmem:[#allocation5 + $0x168] sm:$0xff]
    %v134 = vld [vmem:[#allocation5 + $0x170] sm:$0xff]
    %v135 = vld [vmem:[#allocation5 + $0x178] sm:$0xff]
    %v136 = vld [vmem:[#allocation5 + $0x180] sm:$0xff]
    %v137 = vld [vmem:[#allocation5 + $0x188] sm:$0xff]
    %v138 = vld [vmem:[#allocation5 + $0x190] sm:$0xff]
    %v139 = vld [vmem:[#allocation5 + $0x198] sm:$0xff]
    %v140 = vld [vmem:[#allocation5 + $0x1a0] sm:$0xff]
    %v141 = vld [vmem:[#allocation5 + $0x1a8] sm:$0xff]
    %v142 = vld [vmem:[#allocation5 + $0x1b0] sm:$0xff]
    %v143 = vld [vmem:[#allocation5 + $0x1b8] sm:$0xff]
    %v144 = vld [vmem:[#allocation5 + $0x1c0] sm:$0xff]
    %v145 = vld [vmem:[#allocation5 + $0x1c8] sm:$0xff]
    %v146 = vld [vmem:[#allocation5 + $0x1d0] sm:$0xff]
    %v147 = vld [vmem:[#allocation5 + $0x1d8] sm:$0xff]
    %v148 = vld [vmem:[#allocation5 + $0x1e0] sm:$0xff]
    %v149 = vld [vmem:[#allocation5 + $0x1e8] sm:$0xff]
    %v150 = vld [vmem:[#allocation5 + $0x1f0] sm:$0xff]
    %v151 = vld [vmem:[#allocation5 + $0x1f8] sm:$0xff]
    %v152 = vld [vmem:[#allocation5 + $0x200] sm:$0xff]
    %v153 = vld [vmem:[#allocation5 + $0x208] sm:$0xff]
    %v154 = vld [vmem:[#allocation5 + $0x210] sm:$0xff]
    %v155 = vld [vmem:[#allocation5 + $0x218] sm:$0xff]
    %v156 = vld [vmem:[#allocation5 + $0x220] sm:$0xff]
    %v157 = vld [vmem:[#allocation5 + $0x228] sm:$0xff]
    %v158 = vld [vmem:[#allocation5 + $0x230] sm:$0xff]
    %v159 = vld [vmem:[#allocation5 + $0x238] sm:$0xff]
    %v160 = vld [vmem:[#allocation5 + $0x240] sm:$0xff]
    %v161 = vld [vmem:[#allocation5 + $0x248] sm:$0xff]
    %v162 = vld [vmem:[#allocation5 + $0x250] sm:$0xff]
    %v163 = vld [vmem:[#allocation5 + $0x258] sm:$0xff]
    %v164 = vld [vmem:[#allocation5 + $0x260] sm:$0xff]
    %v165 = vld [vmem:[#allocation5 + $0x268] sm:$0xff]
    %v166 = vld [vmem:[#allocation5 + $0x270] sm:$0xff]
    %v167 = vld [vmem:[#allocation5 + $0x278] sm:$0xff]
    %v168 = vld [vmem:[#allocation5 + $0x280] sm:$0xff]
    %v169 = vld [vmem:[#allocation5 + $0x288] sm:$0xff]
    %v170 = vld [vmem:[#allocation5 + $0x290] sm:$0xff]
    %v171 = vld [vmem:[#allocation5 + $0x298] sm:$0xff]
    %v172 = vld [vmem:[#allocation5 + $0x2a0] sm:$0xff]
    %v173 = vld [vmem:[#allocation5 + $0x2a8] sm:$0xff]
    %v174 = vld [vmem:[#allocation5 + $0x2b0] sm:$0xff]
    %v175 = vld [vmem:[#allocation5 + $0x2b8] sm:$0xff]
    %v176 = vld [vmem:[#allocation5 + $0x2c0] sm:$0xff]
    %v177 = vld [vmem:[#allocation5 + $0x2c8] sm:$0xff]
    %v178 = vld [vmem:[#allocation5 + $0x2d0] sm:$0xff]
    %v179 = vld [vmem:[#allocation5 + $0x2d8] sm:$0xff]
    %v180 = vld [vmem:[#allocation5 + $0x2e0] sm:$0xff]
    %v181 = vld [vmem:[#allocation5 + $0x2e8] sm:$0xff]
    %v182 = vld [vmem:[#allocation5 + $0x2f0] sm:$0xff]
    %v183 = vld [vmem:[#allocation5 + $0x2f8] sm:$0xff]
    %184 = vmatprep.subr.mxu0 %v119
    %185 = vmatpush1.msra.mxu0 %v118
    %186 = vmatprep.subr.mxu0 %v117
    %187 = vmatpush1.msra.mxu0 %v116
    %188 = vmatprep.subr.mxu0 %v115
    %189 = vmatpush1.msra.mxu0 %v114
    %190 = vmatprep.subr.mxu0 %v113
    %191 = vmatpush1.msra.mxu0 %v112
    %192 = vmatprep.subr.mxu0 %v111
    %193 = vmatpush1.msra.mxu0 %v110
    %194 = vmatprep.subr.mxu0 %v109
    %195 = vmatpush1.msra.mxu0 %v108
    %196 = vmatprep.subr.mxu0 %v107
    %197 = vmatpush1.msra.mxu0 %v106
    %198 = vmatprep.subr.mxu0 %v105
    %199 = vmatpush1.msra.mxu0 %v104
    %200 = vmatprep.subr.mxu0 %v103
    %201 = vmatpush1.msra.mxu0 %v102
    %202 = vmatprep.subr.mxu0 %v101
    %203 = vmatpush1.msra.mxu0 %v100
    %204 = vmatprep.subr.mxu0 %v99
    %205 = vmatpush1.msra.mxu0 %v98
    %206 = vmatprep.subr.mxu0 %v97
    %207 = vmatpush1.msra.mxu0 %v96
    %208 = vmatprep.subr.mxu0 %v95
    %209 = vmatpush1.msra.mxu0 %v94
    %210 = vmatprep.subr.mxu0 %v93
    %211 = vmatpush1.msra.mxu0 %v92
    %212 = vmatprep.subr.mxu0 %v91
    %213 = vmatpush1.msra.mxu0 %v90
    %214 = vmatprep.subr.mxu0 %v89
    %215 = vmatpush1.msra.mxu0 %v88
    %216 = vmatprep.subr.mxu0 %v151
    %217 = vmatpush2.msra.mxu0 %v150
    %218 = vmatprep.subr.mxu0 %v149
    %219 = vmatpush2.msra.mxu0 %v148
    %220 = vmatprep.subr.mxu0 %v147
    %221 = vmatpush2.msra.mxu0 %v146
    %222 = vmatprep.subr.mxu0 %v145
    %223 = vmatpush2.msra.mxu0 %v144
    %224 = vmatprep.subr.mxu0 %v143
    %225 = vmatpush2.msra.mxu0 %v142
    %226 = vmatprep.subr.mxu0 %v141
    %227 = vmatpush2.msra.mxu0 %v140
    %228 = vmatprep.subr.mxu0 %v139
    %229 = vmatpush2.msra.mxu0 %v138
    %230 = vmatprep.subr.mxu0 %v137
    %231 = vmatpush2.msra.mxu0 %v136
    %232 = vmatprep.subr.mxu0 %v135
    %233 = vmatpush2.msra.mxu0 %v134
    %234 = vmatprep.subr.mxu0 %v133
    %235 = vmatpush2.msra.mxu0 %v132
    %236 = vmatprep.subr.mxu0 %v131
    %237 = vmatpush2.msra.mxu0 %v130
    %238 = vmatprep.subr.mxu0 %v129
    %239 = vmatpush2.msra.mxu0 %v128
    %240 = vmatprep.subr.mxu0 %v127
    %241 = vmatpush2.msra.mxu0 %v126
    %242 = vmatprep.subr.mxu0 %v125
    %243 = vmatpush2.msra.mxu0 %v124
    %244 = vmatprep.subr.mxu0 %v123
    %245 = vmatpush2.msra.mxu0 %v122
    %246 = vmatprep.subr.mxu0 %v121
    %247 = vmatpush2.msra.mxu0 %v120
    %248 = vmatprep.mubr.f32.mxu0 %v41
    %249 = vmatmul.mubr.f32.gmra.mxu0 %v40
    %v250 = vpop.f32.mrf.mxu0
    %v251 = vadd.f32 0.0, %v250
    %v252 = vpop.f32.mrf.mxu0
    %v253 = vadd.f32 0.0, %v252
    %254 = vmatprep.mubr.f32.mxu0 %v44
    %255 = vmatmul.mubr.f32.gmra.mxu0 %v43
    %v256 = vpop.f32.mrf.mxu0
    %v257 = vadd.f32 0.0, %v256
    %v258 = vpop.f32.mrf.mxu0
    %v259 = vadd.f32 0.0, %v258
    %260 = vmatprep.mubr.f32.mxu0 %v47
    %261 = vmatmul.mubr.f32.gmra.mxu0 %v46
    %v262 = vpop.f32.mrf.mxu0
    %v263 = vadd.f32 0.0, %v262
    %v264 = vpop.f32.mrf.mxu0
    %v265 = vadd.f32 0.0, %v264
    %266 = vmatprep.mubr.f32.mxu0 %v50
    %267 = vmatmul.mubr.f32.gmra.mxu0 %v49
    %v268 = vpop.f32.mrf.mxu0
    %v269 = vadd.f32 0.0, %v268
    %v270 = vpop.f32.mrf.mxu0
    %v271 = vadd.f32 0.0, %v270
    %272 = vmatprep.mubr.f32.mxu0 %v53
    %273 = vmatmul.mubr.f32.gmra.mxu0 %v52
    %v274 = vpop.f32.mrf.mxu0
    %v275 = vadd.f32 0.0, %v274
    %v276 = vpop.f32.mrf.mxu0
    %v277 = vadd.f32 0.0, %v276
    %278 = vmatprep.mubr.f32.mxu0 %v56
    %279 = vmatmul.mubr.f32.gmra.mxu0 %v55
    %v280 = vpop.f32.mrf.mxu0
    %v281 = vadd.f32 0.0, %v280
    %v282 = vpop.f32.mrf.mxu0
    %v283 = vadd.f32 0.0, %v282
    %284 = vmatprep.mubr.f32.mxu0 %v59
    %285 = vmatmul.mubr.f32.gmra.mxu0 %v58
    %v286 = vpop.f32.mrf.mxu0
    %v287 = vadd.f32 0.0, %v286
    %v288 = vpop.f32.mrf.mxu0
    %v289 = vadd.f32 0.0, %v288
    %290 = vmatprep.mubr.f32.mxu0 %v62
    %291 = vmatmul.mubr.f32.gmra.mxu0 %v61
    %v292 = vpop.f32.mrf.mxu0
    %v293 = vadd.f32 0.0, %v292
    %v294 = vpop.f32.mrf.mxu0
    %v295 = vadd.f32 0.0, %v294
    %296 = vmatprep.mubr.f32.mxu0 %v65
    %297 = vmatmul.mubr.f32.gmra.mxu0 %v64
    %v298 = vpop.f32.mrf.mxu0
    %v299 = vadd.f32 0.0, %v298
    %v300 = vpop.f32.mrf.mxu0
    %v301 = vadd.f32 0.0, %v300
    %302 = vmatprep.mubr.f32.mxu0 %v68
    %303 = vmatmul.mubr.f32.gmra.mxu0 %v67
    %v304 = vpop.f32.mrf.mxu0
    %v305 = vadd.f32 0.0, %v304
    %v306 = vpop.f32.mrf.mxu0
    %v307 = vadd.f32 0.0, %v306
    %308 = vmatprep.mubr.f32.mxu0 %v71
    %309 = vmatmul.mubr.f32.gmra.mxu0 %v70
    %v310 = vpop.f32.mrf.mxu0
    %v311 = vadd.f32 0.0, %v310
    %v312 = vpop.f32.mrf.mxu0
    %v313 = vadd.f32 0.0, %v312
    %314 = vmatprep.mubr.f32.mxu0 %v74
    %315 = vmatmul.mubr.f32.gmra.mxu0 %v73
    %v316 = vpop.f32.mrf.mxu0
    %v317 = vadd.f32 0.0, %v316
    %v318 = vpop.f32.mrf.mxu0
    %v319 = vadd.f32 0.0, %v318
    %320 = vmatprep.mubr.f32.mxu0 %v77
    %321 = vmatmul.mubr.f32.gmra.mxu0 %v76
    %v322 = vpop.f32.mrf.mxu0
    %v323 = vadd.f32 0.0, %v322
    %v324 = vpop.f32.mrf.mxu0
    %v325 = vadd.f32 0.0, %v324
    %326 = vmatprep.mubr.f32.mxu0 %v80
    %327 = vmatmul.mubr.f32.gmra.mxu0 %v79
    %v328 = vpop.f32.mrf.mxu0
    %v329 = vadd.f32 0.0, %v328
    %v330 = vpop.f32.mrf.mxu0
    %v331 = vadd.f32 0.0, %v330
    %332 = vmatprep.mubr.f32.mxu0 %v83
    %333 = vmatmul.mubr.f32.gmra.mxu0 %v82
    %v334 = vpop.f32.mrf.mxu0
    %v335 = vadd.f32 0.0, %v334
    %v336 = vpop.f32.mrf.mxu0
    %v337 = vadd.f32 0.0, %v336
    %338 = vmatprep.mubr.f32.mxu0 %v86
    %339 = vmatmul.mubr.f32.gmra.mxu0 %v85
    %v340 = vpop.f32.mrf.mxu0
    %v341 = vadd.f32 0.0, %v340
    %v342 = vpop.f32.mrf.mxu0
    %v343 = vadd.f32 0.0, %v342
    %344 = vdwg.mxu0
    %345 = vmatprep.subr.mxu0 %v183
    %346 = vmatpush1.msra.mxu0 %v182
    %347 = vmatprep.subr.mxu0 %v181
    %348 = vmatpush1.msra.mxu0 %v180
    %349 = vmatprep.subr.mxu0 %v179
    %350 = vmatpush1.msra.mxu0 %v178
    %351 = vmatprep.subr.mxu0 %v177
    %352 = vmatpush1.msra.mxu0 %v176
    %353 = vmatprep.subr.mxu0 %v175
    %354 = vmatpush1.msra.mxu0 %v174
    %355 = vmatprep.subr.mxu0 %v173
    %356 = vmatpush1.msra.mxu0 %v172
    %357 = vmatprep.subr.mxu0 %v171
    %358 = vmatpush1.msra.mxu0 %v170
    %359 = vmatprep.subr.mxu0 %v169
    %360 = vmatpush1.msra.mxu0 %v168
    %361 = vmatprep.subr.mxu0 %v167
    %362 = vmatpush1.msra.mxu0 %v166
    %363 = vmatprep.subr.mxu0 %v165
    %364 = vmatpush1.msra.mxu0 %v164
    %365 = vmatprep.subr.mxu0 %v163
    %366 = vmatpush1.msra.mxu0 %v162
    %367 = vmatprep.subr.mxu0 %v161
    %368 = vmatpush1.msra.mxu0 %v160
    %369 = vmatprep.subr.mxu0 %v159
    %370 = vmatpush1.msra.mxu0 %v158
    %371 = vmatprep.subr.mxu0 %v157
    %372 = vmatpush1.msra.mxu0 %v156
    %373 = vmatprep.subr.mxu0 %v155
    %374 = vmatpush1.msra.mxu0 %v154
    %375 = vmatprep.subr.mxu0 %v153
    %376 = vmatpush1.msra.mxu0 %v152
    %377 = vmatprep.subr.mxu0 0.0
    %378 = vmatpush2.msra.mxu0 0.0
    %379 = vmatprep.subr.mxu0 0.0
    %380 = vmatpush2.msra.mxu0 0.0
    %381 = vmatprep.subr.mxu0 0.0
    %382 = vmatpush2.msra.mxu0 0.0
    %383 = vmatprep.subr.mxu0 0.0
    %384 = vmatpush2.msra.mxu0 0.0
    %385 = vmatprep.subr.mxu0 0.0
    %386 = vmatpush2.msra.mxu0 0.0
    %387 = vmatprep.subr.mxu0 0.0
    %388 = vmatpush2.msra.mxu0 0.0
    %389 = vmatprep.subr.mxu0 0.0
    %390 = vmatpush2.msra.mxu0 0.0
    %391 = vmatprep.subr.mxu0 0.0
    %392 = vmatpush2.msra.mxu0 0.0
    %393 = vmatprep.subr.mxu0 0.0
    %394 = vmatpush2.msra.mxu0 0.0
    %395 = vmatprep.subr.mxu0 0.0
    %396 = vmatpush2.msra.mxu0 0.0
    %397 = vmatprep.subr.mxu0 0.0
    %398 = vmatpush2.msra.mxu0 0.0
    %399 = vmatprep.subr.mxu0 0.0
    %400 = vmatpush2.msra.mxu0 0.0
    %401 = vmatprep.subr.mxu0 0.0
    %402 = vmatpush2.msra.mxu0 0.0
    %403 = vmatprep.subr.mxu0 0.0
    %404 = vmatpush2.msra.mxu0 0.0
    %405 = vmatprep.subr.mxu0 0.0
    %406 = vmatpush2.msra.mxu0 0.0
    %407 = vmatprep.subr.mxu0 0.0
    %408 = vmatpush2.msra.mxu0 0.0
    %409 = vmatprep.mubr.f32.mxu0 0.0
    %410 = vmatmul.mubr.f32.gmra.mxu0 %v42
    %v411 = vpop.f32.mrf.mxu0
    %v412 = vadd.f32 %v251, %v411
    %v413 = vpop.f32.mrf.mxu0
    %v414 = vadd.f32 %v253, %v413
    %415 = vmatprep.mubr.f32.mxu0 0.0
    %416 = vmatmul.mubr.f32.gmra.mxu0 %v45
    %v417 = vpop.f32.mrf.mxu0
    %v418 = vadd.f32 %v257, %v417
    %v419 = vpop.f32.mrf.mxu0
    %v420 = vadd.f32 %v259, %v419
    %421 = vmatprep.mubr.f32.mxu0 0.0
    %422 = vmatmul.mubr.f32.gmra.mxu0 %v48
    %v423 = vpop.f32.mrf.mxu0
    %v424 = vadd.f32 %v263, %v423
    %v425 = vpop.f32.mrf.mxu0
    %v426 = vadd.f32 %v265, %v425
    %427 = vmatprep.mubr.f32.mxu0 0.0
    %428 = vmatmul.mubr.f32.gmra.mxu0 %v51
    %v429 = vpop.f32.mrf.mxu0
    %v430 = vadd.f32 %v269, %v429
    %v431 = vpop.f32.mrf.mxu0
    %v432 = vadd.f32 %v271, %v431
    %433 = vmatprep.mubr.f32.mxu0 0.0
    %434 = vmatmul.mubr.f32.gmra.mxu0 %v54
    %v435 = vpop.f32.mrf.mxu0
    %v436 = vadd.f32 %v275, %v435
    %v437 = vpop.f32.mrf.mxu0
    %v438 = vadd.f32 %v277, %v437
    %439 = vmatprep.mubr.f32.mxu0 0.0
    %440 = vmatmul.mubr.f32.gmra.mxu0 %v57
    %v441 = vpop.f32.mrf.mxu0
    %v442 = vadd.f32 %v281, %v441
    %v443 = vpop.f32.mrf.mxu0
    %v444 = vadd.f32 %v283, %v443
    %445 = vmatprep.mubr.f32.mxu0 0.0
    %446 = vmatmul.mubr.f32.gmra.mxu0 %v60
    %v447 = vpop.f32.mrf.mxu0
    %v448 = vadd.f32 %v287, %v447
    %v449 = vpop.f32.mrf.mxu0
    %v450 = vadd.f32 %v289, %v449
    %451 = vmatprep.mubr.f32.mxu0 0.0
    %452 = vmatmul.mubr.f32.gmra.mxu0 %v63
    %v453 = vpop.f32.mrf.mxu0
    %v454 = vadd.f32 %v293, %v453
    %v455 = vpop.f32.mrf.mxu0
    %v456 = vadd.f32 %v295, %v455
    %457 = vmatprep.mubr.f32.mxu0 0.0
    %458 = vmatmul.mubr.f32.gmra.mxu0 %v66
    %v459 = vpop.f32.mrf.mxu0
    %v460 = vadd.f32 %v299, %v459
    %v461 = vpop.f32.mrf.mxu0
    %v462 = vadd.f32 %v301, %v461
    %463 = vmatprep.mubr.f32.mxu0 0.0
    %464 = vmatmul.mubr.f32.gmra.mxu0 %v69
    %v465 = vpop.f32.mrf.mxu0
    %v466 = vadd.f32 %v305, %v465
    %v467 = vpop.f32.mrf.mxu0
    %v468 = vadd.f32 %v307, %v467
    %469 = vmatprep.mubr.f32.mxu0 0.0
    %470 = vmatmul.mubr.f32.gmra.mxu0 %v72
    %v471 = vpop.f32.mrf.mxu0
    %v472 = vadd.f32 %v311, %v471
    %v473 = vpop.f32.mrf.mxu0
    %v474 = vadd.f32 %v313, %v473
    %475 = vmatprep.mubr.f32.mxu0 0.0
    %476 = vmatmul.mubr.f32.gmra.mxu0 %v75
    %v477 = vpop.f32.mrf.mxu0
    %v478 = vadd.f32 %v317, %v477
    %v479 = vpop.f32.mrf.mxu0
    %v480 = vadd.f32 %v319, %v479
    %481 = vmatprep.mubr.f32.mxu0 0.0
    %482 = vmatmul.mubr.f32.gmra.mxu0 %v78
    %v483 = vpop.f32.mrf.mxu0
    %v484 = vadd.f32 %v323, %v483
    %v485 = vpop.f32.mrf.mxu0
    %v486 = vadd.f32 %v325, %v485
    %487 = vmatprep.mubr.f32.mxu0 0.0
    %488 = vmatmul.mubr.f32.gmra.mxu0 %v81
    %v489 = vpop.f32.mrf.mxu0
    %v490 = vadd.f32 %v329, %v489
    %v491 = vpop.f32.mrf.mxu0
    %v492 = vadd.f32 %v331, %v491
    %493 = vmatprep.mubr.f32.mxu0 0.0
    %494 = vmatmul.mubr.f32.gmra.mxu0 %v84
    %v495 = vpop.f32.mrf.mxu0
    %v496 = vadd.f32 %v335, %v495
    %v497 = vpop.f32.mrf.mxu0
    %v498 = vadd.f32 %v337, %v497
    %499 = vmatprep.mubr.f32.mxu0 0.0
    %500 = vmatmul.mubr.f32.gmra.mxu0 %v87
    %v501 = vpop.f32.mrf.mxu0
    %v502 = vadd.f32 %v341, %v501
    %v503 = vpop.f32.mrf.mxu0
    %v504 = vadd.f32 %v343, %v503
    %505 = vdwg.mxu0
    %v506 = vadd.f32 %v412, %v418
    %v507 = vadd.f32 %v506, %v424
    %v508 = vadd.f32 %v507, %v430
    %v509 = vadd.f32 %v508, %v436
    %v510 = vadd.f32 %v509, %v442
    %v511 = vadd.f32 %v510, %v448
    %v512 = vadd.f32 %v511, %v454
    %v513 = vadd.f32 %v512, %v460
    %v514 = vadd.f32 %v513, %v466
    %v515 = vadd.f32 %v514, %v472
    %v516 = vadd.f32 %v515, %v478
    %v517 = vadd.f32 %v516, %v484
    %v518 = vadd.f32 %v517, %v490
    %v519 = vadd.f32 %v518, %v496
    %v520 = vadd.f32 %v519, %v502
    %v521 = vrot.slane %v520, 4
    %v522 = vadd.f32 %v520, %v521
    %v523 = vrot.slane %v522, 2
    %v524 = vadd.f32 %v522, %v523
    %v525 = vrot.slane %v524, 1
    %v526 = vadd.f32 %v524, %v525
    %v527 = vadd.f32 %v414, %v420
    %v528 = vadd.f32 %v527, %v426
    %v529 = vadd.f32 %v528, %v432
    %v530 = vadd.f32 %v529, %v438
    %v531 = vadd.f32 %v530, %v444
    %v532 = vadd.f32 %v531, %v450
    %v533 = vadd.f32 %v532, %v456
    %v534 = vadd.f32 %v533, %v462
    %v535 = vadd.f32 %v534, %v468
    %v536 = vadd.f32 %v535, %v474
    %v537 = vadd.f32 %v536, %v480
    %v538 = vadd.f32 %v537, %v486
    %v539 = vadd.f32 %v538, %v492
    %v540 = vadd.f32 %v539, %v498
    %v541 = vadd.f32 %v540, %v504
    %v542 = vrot.slane %v541, 4
    %v543 = vadd.f32 %v541, %v542
    %v544 = vrot.slane %v543, 2
    %v545 = vadd.f32 %v543, %v544
    %v546 = vrot.slane %v545, 1
    %v547 = vadd.f32 %v545, %v546
    %v548 = vmul.f32 %v412, %v412
    %v549 = vmul.f32 %v414, %v414
    %v550 = vmul.f32 %v418, %v418
    %v551 = vmul.f32 %v420, %v420
    %v552 = vmul.f32 %v424, %v424
    %v553 = vmul.f32 %v426, %v426
    %v554 = vmul.f32 %v430, %v430
    %v555 = vmul.f32 %v432, %v432
    %v556 = vmul.f32 %v436, %v436
    %v557 = vmul.f32 %v438, %v438
    %v558 = vmul.f32 %v442, %v442
    %v559 = vmul.f32 %v444, %v444
    %v560 = vmul.f32 %v448, %v448
    %v561 = vmul.f32 %v450, %v450
    %v562 = vmul.f32 %v454, %v454
    %v563 = vmul.f32 %v456, %v456
    %v564 = vmul.f32 %v460, %v460
    %v565 = vmul.f32 %v462, %v462
    %v566 = vmul.f32 %v466, %v466
    %v567 = vmul.f32 %v468, %v468
    %v568 = vmul.f32 %v472, %v472
    %v569 = vmul.f32 %v474, %v474
    %v570 = vmul.f32 %v478, %v478
    %v571 = vmul.f32 %v480, %v480
    %v572 = vmul.f32 %v484, %v484
    %v573 = vmul.f32 %v486, %v486
    %v574 = vmul.f32 %v490, %v490
    %v575 = vmul.f32 %v492, %v492
    %v576 = vmul.f32 %v496, %v496
    %v577 = vmul.f32 %v498, %v498
    %v578 = vmul.f32 %v502, %v502
    %v579 = vmul.f32 %v504, %v504
    %v580 = vadd.f32 %v548, %v550
    %v581 = vadd.f32 %v580, %v552
    %v582 = vadd.f32 %v581, %v554
    %v583 = vadd.f32 %v582, %v556
    %v584 = vadd.f32 %v583, %v558
    %v585 = vadd.f32 %v584, %v560
    %v586 = vadd.f32 %v585, %v562
    %v587 = vadd.f32 %v586, %v564
    %v588 = vadd.f32 %v587, %v566
    %v589 = vadd.f32 %v588, %v568
    %v590 = vadd.f32 %v589, %v570
    %v591 = vadd.f32 %v590, %v572
    %v592 = vadd.f32 %v591, %v574
    %v593 = vadd.f32 %v592, %v576
    %v594 = vadd.f32 %v593, %v578
    %v595 = vrot.slane %v594, 4
    %v596 = vadd.f32 %v594, %v595
    %v597 = vrot.slane %v596, 2
    %v598 = vadd.f32 %v596, %v597
    %v599 = vrot.slane %v598, 1
    %v600 = vadd.f32 %v598, %v599
    %v601 = vadd.f32 %v549, %v551
    %v602 = vadd.f32 %v601, %v553
    %v603 = vadd.f32 %v602, %v555
    %v604 = vadd.f32 %v603, %v557
    %v605 = vadd.f32 %v604, %v559
    %v606 = vadd.f32 %v605, %v561
    %v607 = vadd.f32 %v606, %v563
    %v608 = vadd.f32 %v607, %v565
    %v609 = vadd.f32 %v608, %v567
    %v610 = vadd.f32 %v609, %v569
    %v611 = vadd.f32 %v610, %v571
    %v612 = vadd.f32 %v611, %v573
    %v613 = vadd.f32 %v612, %v575
    %v614 = vadd.f32 %v613, %v577
    %v615 = vadd.f32 %v614, %v579
    %v616 = vrot.slane %v615, 4
    %v617 = vadd.f32 %v615, %v616
    %v618 = vrot.slane %v617, 2
    %v619 = vadd.f32 %v617, %v618
    %v620 = vrot.slane %v619, 1
    %v621 = vadd.f32 %v619, %v620
    %vm622 = vcmask 1040384
    %v623 = vsel %vm622, %v526, %v600
    %v624 = vsel %vm622, %v547, %v621
    %v627 = vcombine.low %v623, %v624
    %v629 = vunpack.c.l.s4 1983009808
    %v630 = vunpack.c.0.s8 %v629
    %v631 = vlaneseq
    %v632 = vshrl.u32 %v631, 7
    %v633 = vsub.s32 %v630, %v632
    %v634 = vrot.slane %v627, %v633
    %636 = vst [vmem:[#allocation7] sm:$0xf] %v634
    // Predicated region
    $region18: #{tpu_custom_call.1} parent=1 // pred_check
      _
    $region19: #{tpu_custom_call.1} parent=1 // pred_check_branch
      %638 = sbr.rel (0) target = $region21
    $region20: #{tpu_custom_call.1} parent=1 // pred_region
      %s640 = ssub.s32 64, 64
      %641 = vsyncadd [#allocation4], %s640
      %s643 = sshll.u32 [#allocation7], 4
      %s644 = int_to_ptr.vmem [resolvable:$true] %s643
      %646 = dma.vmem_to_hbm [thread:$0]  %s644, 64, %s2, [#allocation4]
    $region21: #{tpu_custom_call.1} parent=1 // pred_fallthru
      _
    // Predicated region
    $region22: #{tpu_custom_call.1} parent=1 // pred_check
      _
    $region23: #{tpu_custom_call.1} parent=1 // pred_check_branch
      %648 = sbr.rel (0) target = $region25
    $region24: #{tpu_custom_call.1} parent=1 // pred_region
      %649 = dma.done [#allocation4], 64
    $region25: #{tpu_custom_call.1} parent=1 // pred_fallthru
      _
    %650 = vsyncpa [#allocation3], 1
    %651 = vsyncpa [#allocation6], 1
    %652 = vsyncpa [#allocation4], 1

</llo_original>
